<compile_context>
chip_gen: v5e
topology: v5e:2x2
jax: 0.10.0
libtpu: 0.0.40
codegen_flags: <defaults>
</compile_context>

<pallas_src>
import functools

import jax
import jax.numpy as jnp
from jax.experimental import pallas as pl
from jax.experimental.pallas import tpu as pltpu


_LANE = 128          # feature axes padded to multiples of the lane width
_BATCH_ALIGN = 16    # sublane alignment valid for both f32 (8) and bf16 (16)
_MIB = 1024 * 1024


def _round_up(x, m):
    return (x + m - 1) // m * m


def _vmem_capacity_bytes():
    try:
        return int(pltpu.get_tpu_info().vmem_capacity_bytes)
    except Exception:
        return 64 * _MIB  # conservative default (v7x has the smallest VMEM)


def _default_mxu():
    try:
        kind = jax.devices()[0].device_kind.lower()
    except Exception:
        return "f32"
    if "v6" in kind or "v7" in kind or "7x" in kind:
        return "bf16"    # bf16-native MXUs on v6e / v7x
    return "f32"


# -----------------------------------------------------------------------------
# Kernel body (one batch tile per grid step; weights resident in VMEM)
# -----------------------------------------------------------------------------
def _hpc_kernel(mxu_dtype, approx, ts_ref,
                ec3input_ref, ca3_ref, ec3_last_ref, ec5_last_ref,
                wca3ca1_ref, wec3ca1_ref, wca1ec5_ref,
                ca1bias_ref, ec5bias_ref,
                ec3_out_ref, ec5_out_ref, ca1_out_ref):

    def sigmoid(z):
        if approx:   # EUP reciprocal; only used on the bf16 (loose-tol) path
            return pl.reciprocal(1.0 + jnp.exp(-z), approx=True)
        return jax.nn.sigmoid(z)

    ts = ts_ref[0]                      # SMEM scalar: no recompile when ts changes
    ec3 = ec3_last_ref[...]             # f32 (elementwise recurrence stays f32)
    ec5 = ec5_last_ref[...]

    # ca1 = relu( sigmoid(10*(ca3 @ Wca3ca1 - 0.5))
    #             * (1 + 3*sigmoid(ec3 @ Wec3ca1)) - ca1bias )
    ca3_proj = jnp.dot(ca3_ref[...], wca3ca1_ref[...],
                       preferred_element_type=jnp.float32)
    ec3_proj = jnp.dot(ec3.astype(mxu_dtype), wec3ca1_ref[...],
                       preferred_element_type=jnp.float32)
    gate = sigmoid(10.0 * (ca3_proj - 0.5))
    mod = 1.0 + 3.0 * sigmoid(ec3_proj)
    ca1 = jnp.maximum(gate * mod - ca1bias_ref[...], 0.0)

    # ec5 = squash( ec5 + 10*ts*(ca1 @ Wca1ec5) + ec5bias )
    ca1_proj = jnp.dot(ca1.astype(mxu_dtype), wca1ec5_ref[...],
                       preferred_element_type=jnp.float32)
    ec5 = ec5 + (10.0 * ts) * ca1_proj + ec5bias_ref[...]
    ec5 = 0.69 + 0.3 * sigmoid(4.0 * (ec5 - 0.3))

    # ec3 = ec5 * ec3_last + 0.6 * ec3input
    ec3_out_ref[...] = ec5 * ec3 + 0.6 * ec3input_ref[...]
    ec5_out_ref[...] = ec5
    ca1_out_ref[...] = ca1


# -----------------------------------------------------------------------------
# Tile / VMEM sizing
# -----------------------------------------------------------------------------
def _choose_tile(bs_p, ec_pd, ca1_pd, ca3_pd, mxu_bytes):
    """Batch-tile size (a divisor of bs_p) and scoped-VMEM limit."""
    cap = _vmem_capacity_bytes()
    budget = max(24 * _MIB, int(0.70 * cap))   # ~45 MiB on v7x, ~90 MiB on v5e/v6e

    # Grid-invariant blocks (constant index_map -> fetched once, stay resident):
    # charged once, weights at the MXU dtype size.
    const_bytes = (mxu_bytes * (ca3_pd * ca1_pd + ec_pd * ca1_pd + ca1_pd * ec_pd)
                   + 4 * (ca1_pd + ec_pd))

    def stream_bytes(t):   # batch-streamed blocks: double-buffered
        in_b = t * (4 * ec_pd + mxu_bytes * ca3_pd + 4 * ec_pd + 4 * ec_pd)
        out_b = t * (4 * ec_pd + 4 * ec_pd + 4 * ca1_pd)
        return 2 * (in_b + out_b)

    # Target >= 4 grid steps when the batch allows it (keeps both v7x
    # TensorCores fed and gives the DMA pipeline steps to overlap); cap the
    # tile at 1024 rows; shrink until the footprint fits the budget.
    min_steps = 4
    tb_cap = min(bs_p, 1024,
                 max(_BATCH_ALIGN, _round_up(pl.cdiv(bs_p, min_steps), _BATCH_ALIGN)))
    while tb_cap > _BATCH_ALIGN and const_bytes + stream_bytes(tb_cap) > budget:
        tb_cap = max(_BATCH_ALIGN, _round_up(tb_cap // 2, _BATCH_ALIGN))

    # Largest divisor of bs_p that is a multiple of _BATCH_ALIGN and <= tb_cap.
    m = bs_p // _BATCH_ALIGN
    d = max(1, min(m, tb_cap // _BATCH_ALIGN))
    while d > 1 and m % d != 0:
        d -= 1
    tb = _BATCH_ALIGN * d

    # Scoped-VMEM limit = estimate + headroom (+ one extra copy of the
    # constants in case the pipeliner double-buffers them), below capacity.
    footprint = const_bytes + stream_bytes(tb)
    vmem_limit = int(min(cap - 2 * _MIB,
                         max(footprint + const_bytes + 8 * _MIB, 32 * _MIB)))
    return tb, vmem_limit


# -----------------------------------------------------------------------------
# Padding helpers (call once per sequence, NOT once per step)
# -----------------------------------------------------------------------------
def _pad2(x, rows, cols, dtype):
    x = jnp.asarray(x, dtype)
    return jnp.pad(x, ((0, rows - x.shape[0]), (0, cols - x.shape[1])))


def prepare_params(params, *, mxu=None):
    """Pad & cast weights/biases to lane-dense shapes ONCE; reuse every step."""
    if mxu is None:
        mxu = _default_mxu()
    mxu_dtype = jnp.bfloat16 if mxu == "bf16" else jnp.float32
    ca3num, ca1num = params["wca3ca1"].shape
    ecnum = params["wec3ca1"].shape[0]
    ec_pd, ca1_pd, ca3_pd = (_round_up(n, _LANE) for n in (ecnum, ca1num, ca3num))
    return dict(
        wca3ca1=_pad2(params["wca3ca1"], ca3_pd, ca1_pd, mxu_dtype),
        wec3ca1=_pad2(params["wec3ca1"], ec_pd, ca1_pd, mxu_dtype),
        wca1ec5=_pad2(params["wca1ec5"], ca1_pd, ec_pd, mxu_dtype),
        ca1bias=_pad2(params["ca1bias"].reshape(1, -1), 1, ca1_pd, jnp.float32),
        ec5bias=_pad2(params["ec5bias"].reshape(1, -1), 1, ec_pd, jnp.float32),
    )


def pad_activation(x, bs_p, feat_p, dtype=jnp.float32):
    """Zero-pad a (bs, feat) activation to the padded (bs_p, feat_p) layout."""
    return _pad2(x, bs_p, feat_p, dtype)


def padded_batch(bs):
    return _round_up(bs, _BATCH_ALIGN)


# -----------------------------------------------------------------------------
# One step on already-padded arrays (state stays padded across timesteps)
# -----------------------------------------------------------------------------
@jax.jit
def hpc_step_padded(padded_params, ec3input, ca3, ec3_last, ec5_last, ts):
    """One HPCSingleLoop step on padded, lane-dense arrays.

    ec3input, ec3_last, ec5_last : (bs_p, ec_pd)  float32
    ca3                          : (bs_p, ca3_pd) in the params' MXU dtype
    padded_params                : output of prepare_params()
    Returns (ec3, ec5, ca1) in the SAME padded layout -> no per-step pad/slice.
    """
    bs_p, ec_pd = ec3input.shape
    ca3_pd = ca3.shape[1]
    ca3w_pd, ca1_pd = padded_params["wca3ca1"].shape
    mxu_dtype = padded_params["wca3ca1"].dtype
    mxu_bytes = jnp.dtype(mxu_dtype).itemsize
    approx = jnp.dtype(mxu_dtype) == jnp.bfloat16   # approx EUP sigmoid on bf16 path

    assert bs_p % _BATCH_ALIGN == 0 and ec_pd % _LANE == 0
    assert ca3_pd == ca3w_pd and ca1_pd % _LANE == 0 and ca3_pd % _LANE == 0
    assert ec3_last.shape == (bs_p, ec_pd) and ec5_last.shape == (bs_p, ec_pd)

    ca3 = ca3.astype(mxu_dtype)   # no-op when the caller already padded to mxu dtype
    ts_arr = jnp.asarray(ts, jnp.float32).reshape((1,))

    tb, vmem_limit = _choose_tile(bs_p, ec_pd, ca1_pd, ca3_pd, mxu_bytes)
    grid = (bs_p // tb,)

    vmem = pltpu.MemorySpace.VMEM
    smem = pltpu.MemorySpace.SMEM

    def act_spec(feat):     # batch-streamed, double-buffered behind the MXU
        return pl.BlockSpec((tb, feat), lambda i: (i, 0), memory_space=vmem)

    def const_spec(shape):  # grid-invariant: fetched once, stays resident
        return pl.BlockSpec(shape, lambda i: (0, 0), memory_space=vmem)

    in_specs = [
        pl.BlockSpec(memory_space=smem),      # ts (SMEM scalar)
        act_spec(ec_pd),                      # ec3input
        act_spec(ca3_pd),                     # ca3
        act_spec(ec_pd),                      # ec3_last
        act_spec(ec_pd),                      # ec5_last
        const_spec((ca3_pd, ca1_pd)),         # wca3ca1
        const_spec((ec_pd, ca1_pd)),          # wec3ca1
        const_spec((ca1_pd, ec_pd)),          # wca1ec5
        const_spec((1, ca1_pd)),              # ca1bias
        const_spec((1, ec_pd)),               # ec5bias
    ]
    out_specs = (act_spec(ec_pd), act_spec(ec_pd), act_spec(ca1_pd))

    return pl.pallas_call(
        functools.partial(_hpc_kernel, mxu_dtype, approx),
        out_shape=(
            jax.ShapeDtypeStruct((bs_p, ec_pd), jnp.float32),    # ec3
            jax.ShapeDtypeStruct((bs_p, ec_pd), jnp.float32),    # ec5
            jax.ShapeDtypeStruct((bs_p, ca1_pd), jnp.float32),   # ca1
        ),
        grid=grid,
        in_specs=in_specs,
        out_specs=out_specs,
        # ec3_last -> ec3 output, ec5_last -> ec5 output: in-place state update.
        input_output_aliases={3: 0, 4: 1},
        compiler_params=pltpu.CompilerParams(
            dimension_semantics=("parallel",),
            vmem_limit_bytes=vmem_limit),
    )(ts_arr, ec3input, ca3, ec3_last, ec5_last,
      padded_params["wca3ca1"], padded_params["wec3ca1"],
      padded_params["wca1ec5"], padded_params["ca1bias"],
      padded_params["ec5bias"])


# -----------------------------------------------------------------------------
# One-shot wrapper matching the PyTorch module's forward signature
# -----------------------------------------------------------------------------
def hpc_single_loop(params, ec3input, ca3, ec3_last, ec5_last, ca1_last=None,
                    *, ts=0.1, mxu=None, prepared=None):
    """Pallas implementation of HPCSingleLoop.forward (single call).

    ca1_last is accepted for API parity only: the original forward overwrites
    it before use, so it is never sent to the device (saves a DMA).
    For a T-step recurrence, use prepare_params() + hpc_step_padded() so the
    state stays in the padded layout across steps (see __main__).
    """
    del ca1_last
    if prepared is None:
        prepared = prepare_params(params, mxu=mxu)

    bs, ecnum = ec3input.shape
    ca1num = params["ca1bias"].shape[0]
    ec_pd = prepared["wec3ca1"].shape[0]
    ca3_pd, _ = prepared["wca3ca1"].shape
    mxu_dtype = prepared["wca3ca1"].dtype
    bs_p = padded_batch(bs)

    ec3_o, ec5_o, ca1_o = hpc_step_padded(
        prepared,
        pad_activation(ec3input, bs_p, ec_pd),
        pad_activation(ca3, bs_p, ca3_pd, dtype=mxu_dtype),
        pad_activation(ec3_last, bs_p, ec_pd),
        pad_activation(ec5_last, bs_p, ec_pd),
        jnp.float32(ts))
    return ec3_o[:bs, :ecnum], ec5_o[:bs, :ecnum], ca1_o[:bs, :ca1num]


# -----------------------------------------------------------------------------
# Deterministic init + pure-JAX reference
# -----------------------------------------------------------------------------
def init_params(key, ecnum, ca1num, ca3num):
    """Mirrors HPCSingleLoop.__init__ (wec3ca1/wca1ec5 end up xavier-normal)."""
    k1, k2, k3 = jax.random.split(key, 3)
    wca3ca1 = jax.random.uniform(k1, (ca3num, ca1num), jnp.float32) * 0.01
    wec3ca1 = jax.random.normal(k2, (ecnum, ca1num), jnp.float32) * jnp.sqrt(
        2.0 / (ecnum + ca1num))
    wca1ec5 = jax.random.normal(k3, (ca1num, ecnum), jnp.float32) * jnp.sqrt(
        2.0 / (ca1num + ecnum))
    return dict(wca3ca1=wca3ca1, wec3ca1=wec3ca1, wca1ec5=wca1ec5,
                ca1bias=jnp.zeros((ca1num,), jnp.float32),
                ec5bias=jnp.zeros((ecnum,), jnp.float32))


def _reference(params, ec3input, ca3, ec3_last, ec5_last, ca1_last, ts=0.1):
    del ca1_last  # overwritten before use in the original forward
    ec3, ec5 = ec3_last, ec5_last
    ca1 = jnp.maximum(
        jax.nn.sigmoid(10.0 * (ca3 @ params["wca3ca1"] - 0.5))
        * (1.0 + 3.0 * jax.nn.sigmoid(ec3 @ params["wec3ca1"]))
        - params["ca1bias"], 0.0)
    ec5 = ec5 + 10.0 * ts * (ca1 @ params["wca1ec5"]) + params["ec5bias"]
    ec5 = 0.69 + 0.3 * jax.nn.sigmoid(4.0 * (ec5 - 0.3))
    ec3 = ec5 * ec3 + 0.6 * ec3input
    return ec3, ec5, ca1


if __name__ == "__main__":
    bs, ecnum, ca1num, ca3num = 10, 32, 48, 24
    ts = 0.1

    key = jax.random.PRNGKey(0)
    kp, k1, k2, k3, k4, k5 = jax.random.split(key, 6)
    params = init_params(kp, ecnum, ca1num, ca3num)

    ec3input = jax.random.uniform(k1, (bs, ecnum), jnp.float32)
    ca3 = jax.random.uniform(k2, (bs, ca3num), jnp.float32)
    ec3_last = jax.random.uniform(k3, (bs, ecnum), jnp.float32)
    ec5_last = jax.random.uniform(k4, (bs, ecnum), jnp.float32)
    ca1_last = jax.random.uniform(k5, (bs, ca1num), jnp.float32)

    ec3_r, ec5_r, ca1_r = _reference(params, ec3input, ca3, ec3_last, ec5_last,
                                     ca1_last, ts=ts)

    # --- single step, f32 MXU path (exact sigmoid): tight tolerance ----------
    ec3, ec5, ca1 = jax.block_until_ready(
        hpc_single_loop(params, ec3input, ca3, ec3_last, ec5_last, ca1_last,
                        ts=ts, mxu="f32"))
    assert jnp.allclose(ec3, ec3_r, atol=1e-5), "ec3 mismatch (f32)"
    assert jnp.allclose(ec5, ec5_r, atol=1e-5), "ec5 mismatch (f32)"
    assert jnp.allclose(ca1, ca1_r, atol=1e-5), "ca1 mismatch (f32)"

    # --- single step, bf16 streams + approx-EUP sigmoid: looser tolerance ----
    ec3b, ec5b, ca1b = jax.block_until_ready(
        hpc_single_loop(params, ec3input, ca3, ec3_last, ec5_last, ca1_last,
                        ts=ts, mxu="bf16"))
    assert jnp.allclose(ec3b, ec3_r, atol=2e-2), "ec3 mismatch (bf16)"
    assert jnp.allclose(ec5b, ec5_r, atol=2e-2), "ec5 mismatch (bf16)"
    assert jnp.allclose(ca1b, ca1_r, atol=2e-2), "ca1 mismatch (bf16)"

    # --- T-step recurrence on the padded-state API (no per-step pad/slice) ---
    T = 3
    prepared = prepare_params(params, mxu="f32")
    ec_pd = prepared["wec3ca1"].shape[0]
    ca3_dim_pd = prepared["wca3ca1"].shape[0]
    bs_p = padded_batch(bs)
    ec3input_padded = pad_activation(ec3input, bs_p, ec_pd)           # pad once
    ca3_padded = pad_activation(ca3, bs_p, ca3_dim_pd,
                                dtype=prepared["wca3ca1"].dtype)      # pad once
    ec3_st = pad_activation(ec3_last, bs_p, ec_pd)                    # state stays
    ec5_st = pad_activation(ec5_last, bs_p, ec_pd)                    # padded

    ec3_rr, ec5_rr, ca1_rr = ec3_last, ec5_last, ca1_last
    ca1_st = None
    for _ in range(T):
        ec3_st, ec5_st, ca1_st = hpc_step_padded(
            prepared, ec3input_padded, ca3_padded, ec3_st, ec5_st, jnp.float32(ts))
        ec3_rr, ec5_rr, ca1_rr = _reference(params, ec3input, ca3,
                                            ec3_rr, ec5_rr, ca1_rr, ts=ts)
    jax.block_until_ready((ec3_st, ec5_st, ca1_st))
    assert jnp.allclose(ec3_st[:bs, :ecnum], ec3_rr, atol=1e-4), "ec3 mismatch (T steps)"
    assert jnp.allclose(ec5_st[:bs, :ecnum], ec5_rr, atol=1e-4), "ec5 mismatch (T steps)"
    assert jnp.allclose(ca1_st[:bs, :ca1num], ca1_rr, atol=1e-4), "ca1 mismatch (T steps)"

    print("KERNEL_OK")
</pallas_src>

<mosaic_0001>
module attributes {stable_mosaic.version = 11 : i64} {
  func.func @_hpc_kernel(%arg0: i32, %arg1: memref<1xf32, #tpu.memory_space<smem>>, %arg2: memref<16x128xf32, #tpu.memory_space<vmem>>, %arg3: memref<16x128xf32, #tpu.memory_space<vmem>>, %arg4: memref<16x128xf32, #tpu.memory_space<vmem>>, %arg5: memref<16x128xf32, #tpu.memory_space<vmem>>, %arg6: memref<128x128xf32, #tpu.memory_space<vmem>>, %arg7: memref<128x128xf32, #tpu.memory_space<vmem>>, %arg8: memref<128x128xf32, #tpu.memory_space<vmem>>, %arg9: memref<1x128xf32, #tpu.memory_space<vmem>>, %arg10: memref<1x128xf32, #tpu.memory_space<vmem>>, %arg11: memref<16x128xf32, #tpu.memory_space<vmem>>, %arg12: memref<16x128xf32, #tpu.memory_space<vmem>>, %arg13: memref<16x128xf32, #tpu.memory_space<vmem>>) attributes {dimension_semantics = [#tpu.dimension_semantics<parallel>], iteration_bounds = array<i64: 1>, scalar_prefetch = 0 : i64, scratch_operands = 0 : i64, tpu.core_type = #tpu.core_type<tc>, window_params = [{transform_indices = @transform_0, window_bounds = array<i64: 1>}, {transform_indices = @transform_1, window_bounds = array<i64: 16, 128>}, {transform_indices = @transform_2, window_bounds = array<i64: 16, 128>}, {transform_indices = @transform_3, window_bounds = array<i64: 16, 128>}, {transform_indices = @transform_4, window_bounds = array<i64: 16, 128>}, {pipeline_mode = #tpu.pipeline_mode<synchronous>, transform_indices = @transform_5, window_bounds = array<i64: 128, 128>}, {pipeline_mode = #tpu.pipeline_mode<synchronous>, transform_indices = @transform_6, window_bounds = array<i64: 128, 128>}, {pipeline_mode = #tpu.pipeline_mode<synchronous>, transform_indices = @transform_7, window_bounds = array<i64: 128, 128>}, {pipeline_mode = #tpu.pipeline_mode<synchronous>, transform_indices = @transform_8, window_bounds = array<i64: 1, 128>}, {pipeline_mode = #tpu.pipeline_mode<synchronous>, transform_indices = @transform_9, window_bounds = array<i64: 1, 128>}, {transform_indices = @transform_10, window_bounds = array<i64: 16, 128>}, {transform_indices = @transform_11, window_bounds = array<i64: 16, 128>}, {transform_indices = @transform_12, window_bounds = array<i64: 16, 128>}]} {
    %c0 = arith.constant 0 : index
    %0 = memref.load %arg1[%c0] : memref<1xf32, #tpu.memory_space<smem>>
    %c0_0 = arith.constant 0 : index
    %c0_1 = arith.constant 0 : index
    %1 = vector.load %arg4[%c0_0, %c0_1] : memref<16x128xf32, #tpu.memory_space<vmem>>, vector<16x128xf32>
    %c0_2 = arith.constant 0 : index
    %c0_3 = arith.constant 0 : index
    %2 = vector.load %arg5[%c0_2, %c0_3] : memref<16x128xf32, #tpu.memory_space<vmem>>, vector<16x128xf32>
    %c0_4 = arith.constant 0 : index
    %c0_5 = arith.constant 0 : index
    %3 = vector.load %arg3[%c0_4, %c0_5] : memref<16x128xf32, #tpu.memory_space<vmem>>, vector<16x128xf32>
    %c0_6 = arith.constant 0 : index
    %c0_7 = arith.constant 0 : index
    %4 = vector.load %arg6[%c0_6, %c0_7] : memref<128x128xf32, #tpu.memory_space<vmem>>, vector<128x128xf32>
    %cst = arith.constant dense<0.000000e+00> : vector<16x128xf32>
    %5 = tpu.matmul %3, %4, %cst {dimension_numbers = #tpu.dot_dimension_numbers<[1], [0], [0], [1], [0, 0, 1, 1], [], []>} : vector<16x128xf32>, vector<128x128xf32>, vector<16x128xf32> -> vector<16x128xf32>
    %c0_8 = arith.constant 0 : index
    %c0_9 = arith.constant 0 : index
    %6 = vector.load %arg7[%c0_8, %c0_9] : memref<128x128xf32, #tpu.memory_space<vmem>>, vector<128x128xf32>
    %cst_10 = arith.constant dense<0.000000e+00> : vector<16x128xf32>
    %7 = tpu.matmul %1, %6, %cst_10 {dimension_numbers = #tpu.dot_dimension_numbers<[1], [0], [0], [1], [0, 0, 1, 1], [], []>} : vector<16x128xf32>, vector<128x128xf32>, vector<16x128xf32> -> vector<16x128xf32>
    %cst_11 = arith.constant 5.000000e-01 : f32
    %8 = vector.broadcast %cst_11 : f32 to vector<16x128xf32>
    %9 = arith.subf %5, %8 : vector<16x128xf32>
    %cst_12 = arith.constant 1.000000e+01 : f32
    %10 = vector.broadcast %cst_12 : f32 to vector<16x128xf32>
    %11 = arith.mulf %10, %9 : vector<16x128xf32>
    %12 = arith.negf %11 : vector<16x128xf32>
    %13 = math.exp %12 : vector<16x128xf32>
    %cst_13 = arith.constant 1.000000e+00 : f32
    %14 = vector.broadcast %cst_13 : f32 to vector<16x128xf32>
    %15 = arith.addf %14, %13 : vector<16x128xf32>
    %16 = arith.divf %14, %15 : vector<16x128xf32>
    %17 = arith.negf %7 : vector<16x128xf32>
    %18 = math.exp %17 : vector<16x128xf32>
    %cst_14 = arith.constant 1.000000e+00 : f32
    %19 = vector.broadcast %cst_14 : f32 to vector<16x128xf32>
    %20 = arith.addf %19, %18 : vector<16x128xf32>
    %21 = arith.divf %19, %20 : vector<16x128xf32>
    %cst_15 = arith.constant 3.000000e+00 : f32
    %22 = vector.broadcast %cst_15 : f32 to vector<16x128xf32>
    %23 = arith.mulf %22, %21 : vector<16x128xf32>
    %cst_16 = arith.constant 1.000000e+00 : f32
    %24 = vector.broadcast %cst_16 : f32 to vector<16x128xf32>
    %25 = arith.addf %24, %23 : vector<16x128xf32>
    %26 = arith.mulf %16, %25 : vector<16x128xf32>
    %c0_17 = arith.constant 0 : index
    %c0_18 = arith.constant 0 : index
    %27 = vector.load %arg9[%c0_17, %c0_18] : memref<1x128xf32, #tpu.memory_space<vmem>>, vector<1x128xf32>
    %28 = vector.broadcast %27 : vector<1x128xf32> to vector<16x128xf32>
    %29 = arith.subf %26, %28 : vector<16x128xf32>
    %cst_19 = arith.constant 0.000000e+00 : f32
    %30 = vector.broadcast %cst_19 : f32 to vector<16x128xf32>
    %31 = arith.maximumf %29, %30 : vector<16x128xf32>
    %c0_20 = arith.constant 0 : index
    %c0_21 = arith.constant 0 : index
    %32 = vector.load %arg8[%c0_20, %c0_21] : memref<128x128xf32, #tpu.memory_space<vmem>>, vector<128x128xf32>
    %cst_22 = arith.constant dense<0.000000e+00> : vector<16x128xf32>
    %33 = tpu.matmul %31, %32, %cst_22 {dimension_numbers = #tpu.dot_dimension_numbers<[1], [0], [0], [1], [0, 0, 1, 1], [], []>} : vector<16x128xf32>, vector<128x128xf32>, vector<16x128xf32> -> vector<16x128xf32>
    %cst_23 = arith.constant 1.000000e+01 : f32
    %34 = arith.mulf %cst_23, %0 : f32
    %35 = vector.broadcast %34 : f32 to vector<16x128xf32>
    %36 = arith.mulf %35, %33 : vector<16x128xf32>
    %37 = arith.addf %2, %36 : vector<16x128xf32>
    %c0_24 = arith.constant 0 : index
    %c0_25 = arith.constant 0 : index
    %38 = vector.load %arg10[%c0_24, %c0_25] : memref<1x128xf32, #tpu.memory_space<vmem>>, vector<1x128xf32>
    %39 = vector.broadcast %38 : vector<1x128xf32> to vector<16x128xf32>
    %40 = arith.addf %37, %39 : vector<16x128xf32>
    %cst_26 = arith.constant 3.000000e-01 : f32
    %41 = vector.broadcast %cst_26 : f32 to vector<16x128xf32>
    %42 = arith.subf %40, %41 : vector<16x128xf32>
    %cst_27 = arith.constant 4.000000e+00 : f32
    %43 = vector.broadcast %cst_27 : f32 to vector<16x128xf32>
    %44 = arith.mulf %43, %42 : vector<16x128xf32>
    %45 = arith.negf %44 : vector<16x128xf32>
    %46 = math.exp %45 : vector<16x128xf32>
    %cst_28 = arith.constant 1.000000e+00 : f32
    %47 = vector.broadcast %cst_28 : f32 to vector<16x128xf32>
    %48 = arith.addf %47, %46 : vector<16x128xf32>
    %49 = arith.divf %47, %48 : vector<16x128xf32>
    %cst_29 = arith.constant 3.000000e-01 : f32
    %50 = vector.broadcast %cst_29 : f32 to vector<16x128xf32>
    %51 = arith.mulf %50, %49 : vector<16x128xf32>
    %cst_30 = arith.constant 0.689999997 : f32
    %52 = vector.broadcast %cst_30 : f32 to vector<16x128xf32>
    %53 = arith.addf %52, %51 : vector<16x128xf32>
    %54 = arith.mulf %53, %1 : vector<16x128xf32>
    %c0_31 = arith.constant 0 : index
    %c0_32 = arith.constant 0 : index
    %55 = vector.load %arg2[%c0_31, %c0_32] : memref<16x128xf32, #tpu.memory_space<vmem>>, vector<16x128xf32>
    %cst_33 = arith.constant 6.000000e-01 : f32
    %56 = vector.broadcast %cst_33 : f32 to vector<16x128xf32>
    %57 = arith.mulf %56, %55 : vector<16x128xf32>
    %58 = arith.addf %54, %57 : vector<16x128xf32>
    %c0_34 = arith.constant 0 : index
    %c0_35 = arith.constant 0 : index
    %59 = vector.load %arg11[%c0_34, %c0_35] : memref<16x128xf32, #tpu.memory_space<vmem>>, vector<16x128xf32>
    tpu.vector_store %arg11[%c0_34, %c0_35], %58 {strides = array<i32>} : memref<16x128xf32, #tpu.memory_space<vmem>>, vector<16x128xf32>,
    %c0_36 = arith.constant 0 : index
    %c0_37 = arith.constant 0 : index
    %60 = vector.load %arg12[%c0_36, %c0_37] : memref<16x128xf32, #tpu.memory_space<vmem>>, vector<16x128xf32>
    tpu.vector_store %arg12[%c0_36, %c0_37], %53 {strides = array<i32>} : memref<16x128xf32, #tpu.memory_space<vmem>>, vector<16x128xf32>,
    %c0_38 = arith.constant 0 : index
    %c0_39 = arith.constant 0 : index
    %61 = vector.load %arg13[%c0_38, %c0_39] : memref<16x128xf32, #tpu.memory_space<vmem>>, vector<16x128xf32>
    tpu.vector_store %arg13[%c0_38, %c0_39], %31 {strides = array<i32>} : memref<16x128xf32, #tpu.memory_space<vmem>>, vector<16x128xf32>,
    return
  }
  func.func @transform_0(%arg0: i32) -> i32 {
    %c0_i32 = arith.constant 0 : i32
    %c0_i32_0 = arith.constant 0 : i32
    return %c0_i32 : i32
  }
  func.func @transform_1(%arg0: i32) -> (i32, i32) {
    %c0_i32 = arith.constant 0 : i32
    %c0_i32_0 = arith.constant 0 : i32
    return %arg0, %c0_i32 : i32, i32
  }
  func.func @transform_2(%arg0: i32) -> (i32, i32) {
    %c0_i32 = arith.constant 0 : i32
    %c0_i32_0 = arith.constant 0 : i32
    return %arg0, %c0_i32 : i32, i32
  }
  func.func @transform_3(%arg0: i32) -> (i32, i32) {
    %c0_i32 = arith.constant 0 : i32
    %c0_i32_0 = arith.constant 0 : i32
    return %arg0, %c0_i32 : i32, i32
  }
  func.func @transform_4(%arg0: i32) -> (i32, i32) {
    %c0_i32 = arith.constant 0 : i32
    %c0_i32_0 = arith.constant 0 : i32
    return %arg0, %c0_i32 : i32, i32
  }
  func.func @transform_5(%arg0: i32) -> (i32, i32) {
    %c0_i32 = arith.constant 0 : i32
    %c0_i32_0 = arith.constant 0 : i32
    %c0_i32_1 = arith.constant 0 : i32
    return %c0_i32, %c0_i32_0 : i32, i32
  }
  func.func @transform_6(%arg0: i32) -> (i32, i32) {
    %c0_i32 = arith.constant 0 : i32
    %c0_i32_0 = arith.constant 0 : i32
    %c0_i32_1 = arith.constant 0 : i32
    return %c0_i32, %c0_i32_0 : i32, i32
  }
  func.func @transform_7(%arg0: i32) -> (i32, i32) {
    %c0_i32 = arith.constant 0 : i32
    %c0_i32_0 = arith.constant 0 : i32
    %c0_i32_1 = arith.constant 0 : i32
    return %c0_i32, %c0_i32_0 : i32, i32
  }
  func.func @transform_8(%arg0: i32) -> (i32, i32) {
    %c0_i32 = arith.constant 0 : i32
    %c0_i32_0 = arith.constant 0 : i32
    %c0_i32_1 = arith.constant 0 : i32
    return %c0_i32, %c0_i32_0 : i32, i32
  }
  func.func @transform_9(%arg0: i32) -> (i32, i32) {
    %c0_i32 = arith.constant 0 : i32
    %c0_i32_0 = arith.constant 0 : i32
    %c0_i32_1 = arith.constant 0 : i32
    return %c0_i32, %c0_i32_0 : i32, i32
  }
  func.func @transform_10(%arg0: i32) -> (i32, i32) {
    %c0_i32 = arith.constant 0 : i32
    %c0_i32_0 = arith.constant 0 : i32
    return %arg0, %c0_i32 : i32, i32
  }
  func.func @transform_11(%arg0: i32) -> (i32, i32) {
    %c0_i32 = arith.constant 0 : i32
    %c0_i32_0 = arith.constant 0 : i32
    return %arg0, %c0_i32 : i32, i32
  }
  func.func @transform_12(%arg0: i32) -> (i32, i32) {
    %c0_i32 = arith.constant 0 : i32
    %c0_i32_0 = arith.constant 0 : i32
    return %arg0, %c0_i32 : i32, i32
  }
}

</mosaic_0001>

<llo_original>
// kernel: hpc_step_padded.1
$region0: #{hpc_step_padded.1}
  #allocation0 [shape = 'u32[]', space=smem, size = 0x4, offset = 0x4, fixed_abs, tag = 'smem constant byte address 0x4 - core index']
  #allocation1 [shape = 'u32[72,128]{1,0:T(1,128)}', space=vmem, size = 0x9000, scoped, tag = 'internal scratch']
  #allocation2 [shape = 'f32[1]{0:T(128)S(6)}', space=smem, size = 0x200, scoped, tag = 'scoped memory for hpc_step_padded.1']
  %s0 = inlined_call_operand.<no memory space> [shape: f32[1], index: 0, kind: input, shape index: {}]
  %s1 = inlined_call_operand.vmem [shape: f32[16,128], index: 1, kind: input, shape index: {}]
  %s2 = inlined_call_operand.vmem [shape: f32[16,128], index: 2, kind: input, shape index: {}]
  %s3 = inlined_call_operand.hbm [shape: f32[16,128], index: 3, kind: input, shape index: {}, may-alias: {3,10}]
  %s4 = inlined_call_operand.hbm [shape: f32[16,128], index: 4, kind: input, shape index: {}, may-alias: {4,11}]
  %s5 = inlined_call_operand.hbm [shape: f32[128,128], index: 5, kind: input, shape index: {}]
  %s6 = inlined_call_operand.hbm [shape: f32[128,128], index: 6, kind: input, shape index: {}]
  %s7 = inlined_call_operand.hbm [shape: f32[128,128], index: 7, kind: input, shape index: {}]
  %s8 = inlined_call_operand.vmem [shape: f32[1,128], index: 8, kind: input, shape index: {}]
  %s9 = inlined_call_operand.vmem [shape: f32[1,128], index: 9, kind: input, shape index: {}]
  %s10 = inlined_call_operand.hbm [shape: f32[16,128], index: 10, kind: output, shape index: {0}, may-alias: {3,10}]
  %s11 = inlined_call_operand.hbm [shape: f32[16,128], index: 11, kind: output, shape index: {1}, may-alias: {4,11}]
  %s12 = inlined_call_operand.hbm [shape: f32[16,128], index: 12, kind: output, shape index: {2}]
  %13 = xla_tuple %s10, %s11, %s12
  %s14 = sld [smem:[#allocation0]]
  $region86: #{hpc_step_padded.1} parent=0
    _
  %s16 = ssub.s32 1, %s14
  %s17 = scalar_select 0, %s16, %s14
  %18 = sst [smem:[#allocation2]] %s0
  $region1: #{hpc_step_padded.1} parent=0
    #allocation3 [shape = 'u8[8192]{0}', space=vmem, size = 0x2000, scoped, tag = 'input window, operand 3, single buffered']
    #allocation4 [shape = 's32[1]{0}', space=sflag, size = 0x4, scoped, tag = 'scoped memory for hpc_step_padded.1']
    #allocation5 [shape = 's32[1]{0}', space=sflag, size = 0x4, scoped, tag = 'scoped memory for hpc_step_padded.1']
    #allocation6 [shape = 'u8[8192]{0}', space=vmem, size = 0x2000, scoped, tag = 'input window, operand 4, single buffered']
    #allocation7 [shape = 's32[1]{0}', space=sflag, size = 0x4, scoped, tag = 'scoped memory for hpc_step_padded.1']
    #allocation8 [shape = 'u8[65536]{0}', space=vmem, size = 0x10000, scoped, tag = 'input window, operand 5, single buffered']
    #allocation9 [shape = 'u8[65536]{0}', space=vmem, size = 0x10000, scoped, tag = 'input window, operand 6, single buffered']
    #allocation10 [shape = 's32[1]{0}', space=sflag, size = 0x4, scoped, tag = 'scoped memory for hpc_step_padded.1']
    #allocation11 [shape = 'u8[65536]{0}', space=vmem, size = 0x10000, scoped, tag = 'input window, operand 7, single buffered']
    #allocation12 [shape = 'u8[8192]{0}', space=vmem, size = 0x2000, scoped, tag = 'output window, operand 0, single buffered']
    #allocation13 [shape = 'u8[8192]{0}', space=vmem, size = 0x2000, scoped, tag = 'output window, operand 1, single buffered']
    #allocation14 [shape = 's32[1]{0}', space=sflag, size = 0x4, scoped, tag = 'scoped memory for hpc_step_padded.1']
    #allocation15 [shape = 'u8[8192]{0}', space=vmem, size = 0x2000, scoped, tag = 'output window, operand 2, single buffered']
    %19 = vsyncpa [#allocation4], 0
    %20 = vsyncpa [#allocation7], 0
    %21 = vsyncpa [#allocation10], 0
    %22 = vsyncpa [#allocation5], 0
    %23 = vsyncpa [#allocation14], 0
    // Predicated region
    $region2: #{hpc_step_padded.1} parent=1 // pred_check
      _
    $region3: #{hpc_step_padded.1} parent=1 // pred_check_branch
      %25 = sbr.rel (0) target = $region5
    $region4: #{hpc_step_padded.1} parent=1 // pred_region
      _
    $region5: #{hpc_step_padded.1} parent=1 // pred_fallthru
      _
    // Predicated region
    $region6: #{hpc_step_padded.1} parent=1 // pred_check
      _
    $region7: #{hpc_step_padded.1} parent=1 // pred_check_branch
      %27 = sbr.rel (0) target = $region9
    $region8: #{hpc_step_padded.1} parent=1 // pred_region
      _
    $region9: #{hpc_step_padded.1} parent=1 // pred_fallthru
      _
    // Predicated region
    $region10: #{hpc_step_padded.1} parent=1 // pred_check
      _
    $region11: #{hpc_step_padded.1} parent=1 // pred_check_branch
      %29 = sbr.rel (0) target = $region13
    $region12: #{hpc_step_padded.1} parent=1 // pred_region
      _
    $region13: #{hpc_step_padded.1} parent=1 // pred_fallthru
      _
    // Predicated region
    $region14: #{hpc_step_padded.1} parent=1 // pred_check
      _
    $region15: #{hpc_step_padded.1} parent=1 // pred_check_branch
      %31 = sbr.rel (0) target = $region17
    $region16: #{hpc_step_padded.1} parent=1 // pred_region
      %33 = vsyncadd [#allocation4], 0
      %s34 = sshll.u32 %s3, 4
      %s35 = int_to_ptr.hbm [resolvable:$true] %s34
      %s36 = sshll.u32 [#allocation3], 4
      %s37 = int_to_ptr.vmem [resolvable:$true] %s36
      %42 = dma.hbm_to_vmem [thread:$0]  %s35, 256, %s37, [#allocation4], 128, 128, 8
    $region17: #{hpc_step_padded.1} parent=1 // pred_fallthru
      _
    // Predicated region
    $region18: #{hpc_step_padded.1} parent=1 // pred_check
      _
    $region19: #{hpc_step_padded.1} parent=1 // pred_check_branch
      %44 = sbr.rel (0) target = $region21
    $region20: #{hpc_step_padded.1} parent=1 // pred_region
      %46 = vsyncadd [#allocation7], 0
      %s47 = sshll.u32 %s4, 4
      %s48 = int_to_ptr.hbm [resolvable:$true] %s47
      %s49 = sshll.u32 [#allocation6], 4
      %s50 = int_to_ptr.vmem [resolvable:$true] %s49
      %55 = dma.hbm_to_vmem [thread:$0]  %s48, 256, %s50, [#allocation7], 128, 128, 8
    $region21: #{hpc_step_padded.1} parent=1 // pred_fallthru
      _
    // Predicated region
    $region22: #{hpc_step_padded.1} parent=1 // pred_check
      _
    $region23: #{hpc_step_padded.1} parent=1 // pred_check_branch
      %57 = sbr.rel (0) target = $region25
    $region24: #{hpc_step_padded.1} parent=1 // pred_region
      %59 = vsyncadd [#allocation7], 0
      %s60 = sshll.u32 %s5, 4
      %s61 = int_to_ptr.hbm [resolvable:$true] %s60
      %s62 = sshll.u32 [#allocation8], 4
      %s63 = int_to_ptr.vmem [resolvable:$true] %s62
      %68 = dma.hbm_to_vmem [thread:$0]  %s61, 2048, %s63, [#allocation7], 128, 128, 8
    $region25: #{hpc_step_padded.1} parent=1 // pred_fallthru
      _
    // Predicated region
    $region26: #{hpc_step_padded.1} parent=1 // pred_check
      _
    $region27: #{hpc_step_padded.1} parent=1 // pred_check_branch
      %70 = sbr.rel (0) target = $region29
    $region28: #{hpc_step_padded.1} parent=1 // pred_region
      %72 = vsyncadd [#allocation10], 0
      %s73 = sshll.u32 %s6, 4
      %s74 = int_to_ptr.hbm [resolvable:$true] %s73
      %s75 = sshll.u32 [#allocation9], 4
      %s76 = int_to_ptr.vmem [resolvable:$true] %s75
      %81 = dma.hbm_to_vmem [thread:$0]  %s74, 2048, %s76, [#allocation10], 128, 128, 8
    $region29: #{hpc_step_padded.1} parent=1 // pred_fallthru
      _
    // Predicated region
    $region30: #{hpc_step_padded.1} parent=1 // pred_check
      _
    $region31: #{hpc_step_padded.1} parent=1 // pred_check_branch
      %83 = sbr.rel (0) target = $region33
    $region32: #{hpc_step_padded.1} parent=1 // pred_region
      %85 = vsyncadd [#allocation10], 0
      %s86 = sshll.u32 %s7, 4
      %s87 = int_to_ptr.hbm [resolvable:$true] %s86
      %s88 = sshll.u32 [#allocation11], 4
      %s89 = int_to_ptr.vmem [resolvable:$true] %s88
      %94 = dma.hbm_to_vmem [thread:$0]  %s87, 2048, %s89, [#allocation10], 128, 128, 8
    $region33: #{hpc_step_padded.1} parent=1 // pred_fallthru
      _
    // Predicated region
    $region34: #{hpc_step_padded.1} parent=1 // pred_check
      _
    $region35: #{hpc_step_padded.1} parent=1 // pred_check_branch
      %96 = sbr.rel (0) target = $region37
    $region36: #{hpc_step_padded.1} parent=1 // pred_region
      _
    $region37: #{hpc_step_padded.1} parent=1 // pred_fallthru
      _
    // Predicated region
    $region38: #{hpc_step_padded.1} parent=1 // pred_check
      _
    $region39: #{hpc_step_padded.1} parent=1 // pred_check_branch
      %98 = sbr.rel (0) target = $region41
    $region40: #{hpc_step_padded.1} parent=1 // pred_region
      _
    $region41: #{hpc_step_padded.1} parent=1 // pred_fallthru
      _
    // Predicated region
    $region42: #{hpc_step_padded.1} parent=1 // pred_check
      _
    $region43: #{hpc_step_padded.1} parent=1 // pred_check_branch
      %100 = sbr.rel (0) target = $region45
    $region44: #{hpc_step_padded.1} parent=1 // pred_region
      %102 = dma.done [#allocation4], 256
    $region45: #{hpc_step_padded.1} parent=1 // pred_fallthru
      _
    // Predicated region
    $region46: #{hpc_step_padded.1} parent=1 // pred_check
      _
    $region47: #{hpc_step_padded.1} parent=1 // pred_check_branch
      %104 = sbr.rel (0) target = $region49
    $region48: #{hpc_step_padded.1} parent=1 // pred_region
      %106 = dma.done [#allocation7], 256
    $region49: #{hpc_step_padded.1} parent=1 // pred_fallthru
      _
    // Predicated region
    $region50: #{hpc_step_padded.1} parent=1 // pred_check
      _
    $region51: #{hpc_step_padded.1} parent=1 // pred_check_branch
      %108 = sbr.rel (0) target = $region53
    $region52: #{hpc_step_padded.1} parent=1 // pred_region
      %110 = dma.done [#allocation7], 2048
    $region53: #{hpc_step_padded.1} parent=1 // pred_fallthru
      _
    // Predicated region
    $region54: #{hpc_step_padded.1} parent=1 // pred_check
      _
    $region55: #{hpc_step_padded.1} parent=1 // pred_check_branch
      %112 = sbr.rel (0) target = $region57
    $region56: #{hpc_step_padded.1} parent=1 // pred_region
      %114 = dma.done [#allocation10], 2048
    $region57: #{hpc_step_padded.1} parent=1 // pred_fallthru
      _
    // Predicated region
    $region58: #{hpc_step_padded.1} parent=1 // pred_check
      _
    $region59: #{hpc_step_padded.1} parent=1 // pred_check_branch
      %116 = sbr.rel (0) target = $region61
    $region60: #{hpc_step_padded.1} parent=1 // pred_region
      %118 = dma.done [#allocation10], 2048
    $region61: #{hpc_step_padded.1} parent=1 // pred_fallthru
      _
    %s119 = sld [smem:[#allocation2]]
    %v120 = vld [vmem:[#allocation3] sm:$0xff]
    %v121 = vld [vmem:[#allocation3 + $0x8] sm:$0xff]
    %v122 = vld [vmem:[#allocation6] sm:$0xff]
    %v123 = vld [vmem:[#allocation6 + $0x8] sm:$0xff]
    %v124 = vld [vmem:[%s2] sm:$0xff]
    %v125 = vld [vmem:[%s2 + $0x8] sm:$0xff]
    %v126 = vld [vmem:[#allocation8] sm:$0xff]
    %v127 = vld [vmem:[#allocation8 + $0x8] sm:$0xff]
    %v128 = vld [vmem:[#allocation8 + $0x10] sm:$0xff]
    %v129 = vld [vmem:[#allocation8 + $0x18] sm:$0xff]
    %v130 = vld [vmem:[#allocation8 + $0x20] sm:$0xff]
    %v131 = vld [vmem:[#allocation8 + $0x28] sm:$0xff]
    %v132 = vld [vmem:[#allocation8 + $0x30] sm:$0xff]
    %v133 = vld [vmem:[#allocation8 + $0x38] sm:$0xff]
    %v134 = vld [vmem:[#allocation8 + $0x40] sm:$0xff]
    %v135 = vld [vmem:[#allocation8 + $0x48] sm:$0xff]
    %v136 = vld [vmem:[#allocation8 + $0x50] sm:$0xff]
    %v137 = vld [vmem:[#allocation8 + $0x58] sm:$0xff]
    %v138 = vld [vmem:[#allocation8 + $0x60] sm:$0xff]
    %v139 = vld [vmem:[#allocation8 + $0x68] sm:$0xff]
    %v140 = vld [vmem:[#allocation8 + $0x70] sm:$0xff]
    %v141 = vld [vmem:[#allocation8 + $0x78] sm:$0xff]
    %142 = vmatpush.msra.mxu0 %v141
    %143 = vmatpush.msra.mxu0 %v140
    %144 = vmatpush.msra.mxu0 %v139
    %145 = vmatpush.msra.mxu0 %v138
    %146 = vmatpush.msra.mxu0 %v137
    %147 = vmatpush.msra.mxu0 %v136
    %148 = vmatpush.msra.mxu0 %v135
    %149 = vmatpush.msra.mxu0 %v134
    %150 = vmatpush.msra.mxu0 %v133
    %151 = vmatpush.msra.mxu0 %v132
    %152 = vmatpush.msra.mxu0 %v131
    %153 = vmatpush.msra.mxu0 %v130
    %154 = vmatpush.msra.mxu0 %v129
    %155 = vmatpush.msra.mxu0 %v128
    %156 = vmatpush.msra.mxu0 %v127
    %157 = vmatpush.msra.mxu0 %v126
    %158 = vmatmul.f32.gmra.mxu0 %v124
    %v159 = vpop.f32.mrf.mxu0
    %v160 = vadd.f32 0.0, %v159
    %161 = vmatmul.f32.gmra.mxu0 %v125
    %v162 = vpop.f32.mrf.mxu0
    %v163 = vadd.f32 0.0, %v162
    %164 = vdwg.mxu0
    %v165 = vld [vmem:[#allocation9] sm:$0xff]
    %v166 = vld [vmem:[#allocation9 + $0x8] sm:$0xff]
    %v167 = vld [vmem:[#allocation9 + $0x10] sm:$0xff]
    %v168 = vld [vmem:[#allocation9 + $0x18] sm:$0xff]
    %v169 = vld [vmem:[#allocation9 + $0x20] sm:$0xff]
    %v170 = vld [vmem:[#allocation9 + $0x28] sm:$0xff]
    %v171 = vld [vmem:[#allocation9 + $0x30] sm:$0xff]
    %v172 = vld [vmem:[#allocation9 + $0x38] sm:$0xff]
    %v173 = vld [vmem:[#allocation9 + $0x40] sm:$0xff]
    %v174 = vld [vmem:[#allocation9 + $0x48] sm:$0xff]
    %v175 = vld [vmem:[#allocation9 + $0x50] sm:$0xff]
    %v176 = vld [vmem:[#allocation9 + $0x58] sm:$0xff]
    %v177 = vld [vmem:[#allocation9 + $0x60] sm:$0xff]
    %v178 = vld [vmem:[#allocation9 + $0x68] sm:$0xff]
    %v179 = vld [vmem:[#allocation9 + $0x70] sm:$0xff]
    %v180 = vld [vmem:[#allocation9 + $0x78] sm:$0xff]
    %181 = vmatpush.msra.mxu0 %v180
    %182 = vmatpush.msra.mxu0 %v179
    %183 = vmatpush.msra.mxu0 %v178
    %184 = vmatpush.msra.mxu0 %v177
    %185 = vmatpush.msra.mxu0 %v176
    %186 = vmatpush.msra.mxu0 %v175
    %187 = vmatpush.msra.mxu0 %v174
    %188 = vmatpush.msra.mxu0 %v173
    %189 = vmatpush.msra.mxu0 %v172
    %190 = vmatpush.msra.mxu0 %v171
    %191 = vmatpush.msra.mxu0 %v170
    %192 = vmatpush.msra.mxu0 %v169
    %193 = vmatpush.msra.mxu0 %v168
    %194 = vmatpush.msra.mxu0 %v167
    %195 = vmatpush.msra.mxu0 %v166
    %196 = vmatpush.msra.mxu0 %v165
    %197 = vmatmul.f32.gmra.mxu0 %v120
    %v198 = vpop.f32.mrf.mxu0
    %v199 = vadd.f32 0.0, %v198
    %200 = vmatmul.f32.gmra.mxu0 %v121
    %v201 = vpop.f32.mrf.mxu0
    %v202 = vadd.f32 0.0, %v201
    %203 = vdwg.mxu0
    %v204 = vsub.f32 %v160, 0.5
    %v205 = vsub.f32 %v163, 0.5
    %v206 = vmul.f32 %v204, 10.0
    %v207 = vmul.f32 %v205, 10.0
    %v208 = vxor.u32 %v206, 2147483648
    %v209 = vxor.u32 %v207, 2147483648
    %v210 = vmul.f32 %v208, 1.442695
    %v211 = vpow.pop %v210
    %v212 = vmul.f32 %v209, 1.442695
    %v213 = vpow.pop %v212
    %v214 = vadd.f32 %v211, 1.0
    %v215 = vadd.f32 %v213, 1.0
    %v216 = vrcp.pop %v214
    %v217 = vmul.f32 %v214, %v216
    %v218 = vsub.f32 1.0, %v217
    %v219 = vmul.f32 %v216, %v218
    %v220 = vadd.f32 %v216, %v219
    %vm221 = vweird.f32 %v214
    %vm222 = vweird.f32 %v216
    %vm223 = vmor %vm221, %vm222
    %v224 = vsel %vm223, %v216, %v220
    %v225 = vand.u32 2147483647, %v214
    %vm226 = vcmp.eq.f32.partialorder %v225, 8.507059e+37
    %v227 = vand.u32 %v214, 2147483648
    %v228 = vor.u32 1.1754944e-38, %v227
    %v229 = vsel %vm226, %v228, %v224
    %v230 = vmul.f32 1.0, %v229
    %v231 = vrcp.pop %v215
    %v232 = vmul.f32 %v215, %v231
    %v233 = vsub.f32 1.0, %v232
    %v234 = vmul.f32 %v231, %v233
    %v235 = vadd.f32 %v231, %v234
    %vm236 = vweird.f32 %v215
    %vm237 = vweird.f32 %v231
    %vm238 = vmor %vm236, %vm237
    %v239 = vsel %vm238, %v231, %v235
    %v240 = vand.u32 2147483647, %v215
    %vm241 = vcmp.eq.f32.partialorder %v240, 8.507059e+37
    %v242 = vand.u32 %v215, 2147483648
    %v243 = vor.u32 1.1754944e-38, %v242
    %v244 = vsel %vm241, %v243, %v239
    %v245 = vmul.f32 1.0, %v244
    %v246 = vxor.u32 %v199, 2147483648
    %v247 = vxor.u32 %v202, 2147483648
    %v248 = vmul.f32 %v246, 1.442695
    %v249 = vpow.pop %v248
    %v250 = vmul.f32 %v247, 1.442695
    %v251 = vpow.pop %v250
    %v252 = vadd.f32 %v249, 1.0
    %v253 = vadd.f32 %v251, 1.0
    %v254 = vrcp.pop %v252
    %v255 = vmul.f32 %v252, %v254
    %v256 = vsub.f32 1.0, %v255
    %v257 = vmul.f32 %v254, %v256
    %v258 = vadd.f32 %v254, %v257
    %vm259 = vweird.f32 %v252
    %vm260 = vweird.f32 %v254
    %vm261 = vmor %vm259, %vm260
    %v262 = vsel %vm261, %v254, %v258
    %v263 = vand.u32 2147483647, %v252
    %vm264 = vcmp.eq.f32.partialorder %v263, 8.507059e+37
    %v265 = vand.u32 %v252, 2147483648
    %v266 = vor.u32 1.1754944e-38, %v265
    %v267 = vsel %vm264, %v266, %v262
    %v268 = vmul.f32 1.0, %v267
    %v269 = vrcp.pop %v253
    %v270 = vmul.f32 %v253, %v269
    %v271 = vsub.f32 1.0, %v270
    %v272 = vmul.f32 %v269, %v271
    %v273 = vadd.f32 %v269, %v272
    %vm274 = vweird.f32 %v253
    %vm275 = vweird.f32 %v269
    %vm276 = vmor %vm274, %vm275
    %v277 = vsel %vm276, %v269, %v273
    %v278 = vand.u32 2147483647, %v253
    %vm279 = vcmp.eq.f32.partialorder %v278, 8.507059e+37
    %v280 = vand.u32 %v253, 2147483648
    %v281 = vor.u32 1.1754944e-38, %v280
    %v282 = vsel %vm279, %v281, %v277
    %v283 = vmul.f32 1.0, %v282
    %v284 = vmul.f32 %v268, 3.0
    %v285 = vmul.f32 %v283, 3.0
    %v286 = vadd.f32 %v284, 1.0
    %v287 = vadd.f32 %v285, 1.0
    %v288 = vmul.f32 %v230, %v286
    %v289 = vmul.f32 %v245, %v287
    %v290 = vld [vmem:[%s8] sm:$0x1]
    %v292 = vperm.slane %v290, 0
    %v294 = vsub.f32 %v288, %v292
    %v295 = vsub.f32 %v289, %v292
    %v296 = vmax.f32 %v294, 0.0
    %v297 = vmax.f32 %v295, 0.0
    %v298 = vld [vmem:[#allocation11] sm:$0xff]
    %v299 = vld [vmem:[#allocation11 + $0x8] sm:$0xff]
    %v300 = vld [vmem:[#allocation11 + $0x10] sm:$0xff]
    %v301 = vld [vmem:[#allocation11 + $0x18] sm:$0xff]
    %v302 = vld [vmem:[#allocation11 + $0x20] sm:$0xff]
    %v303 = vld [vmem:[#allocation11 + $0x28] sm:$0xff]
    %v304 = vld [vmem:[#allocation11 + $0x30] sm:$0xff]
    %v305 = vld [vmem:[#allocation11 + $0x38] sm:$0xff]
    %v306 = vld [vmem:[#allocation11 + $0x40] sm:$0xff]
    %v307 = vld [vmem:[#allocation11 + $0x48] sm:$0xff]
    %v308 = vld [vmem:[#allocation11 + $0x50] sm:$0xff]
    %v309 = vld [vmem:[#allocation11 + $0x58] sm:$0xff]
    %v310 = vld [vmem:[#allocation11 + $0x60] sm:$0xff]
    %v311 = vld [vmem:[#allocation11 + $0x68] sm:$0xff]
    %v312 = vld [vmem:[#allocation11 + $0x70] sm:$0xff]
    %v313 = vld [vmem:[#allocation11 + $0x78] sm:$0xff]
    %314 = vmatpush.msra.mxu0 %v313
    %315 = vmatpush.msra.mxu0 %v312
    %316 = vmatpush.msra.mxu0 %v311
    %317 = vmatpush.msra.mxu0 %v310
    %318 = vmatpush.msra.mxu0 %v309
    %319 = vmatpush.msra.mxu0 %v308
    %320 = vmatpush.msra.mxu0 %v307
    %321 = vmatpush.msra.mxu0 %v306
    %322 = vmatpush.msra.mxu0 %v305
    %323 = vmatpush.msra.mxu0 %v304
    %324 = vmatpush.msra.mxu0 %v303
    %325 = vmatpush.msra.mxu0 %v302
    %326 = vmatpush.msra.mxu0 %v301
    %327 = vmatpush.msra.mxu0 %v300
    %328 = vmatpush.msra.mxu0 %v299
    %329 = vmatpush.msra.mxu0 %v298
    %330 = vmatmul.f32.gmra.mxu0 %v296
    %v331 = vpop.f32.mrf.mxu0
    %v332 = vadd.f32 0.0, %v331
    %333 = vmatmul.f32.gmra.mxu0 %v297
    %v334 = vpop.f32.mrf.mxu0
    %v335 = vadd.f32 0.0, %v334
    %336 = vdwg.mxu0
    %s337 = smul.f32 %s119, 10.0
    %v338 = vstv %s337
    %v339 = vmul.f32 %v338, %v332
    %v340 = vmul.f32 %v338, %v335
    %v341 = vadd.f32 %v122, %v339
    %v342 = vadd.f32 %v123, %v340
    %v343 = vld [vmem:[%s9] sm:$0x1]
    %v345 = vperm.slane %v343, 0
    %v347 = vadd.f32 %v341, %v345
    %v348 = vadd.f32 %v342, %v345
    %v349 = vsub.f32 %v347, 0.3
    %v350 = vsub.f32 %v348, 0.3
    %v351 = vmul.f32 %v349, 4.0
    %v352 = vmul.f32 %v350, 4.0
    %v353 = vxor.u32 %v351, 2147483648
    %v354 = vxor.u32 %v352, 2147483648
    %v355 = vmul.f32 %v353, 1.442695
    %v356 = vpow.pop %v355
    %v357 = vmul.f32 %v354, 1.442695
    %v358 = vpow.pop %v357
    %v359 = vadd.f32 %v356, 1.0
    %v360 = vadd.f32 %v358, 1.0
    %v361 = vrcp.pop %v359
    %v362 = vmul.f32 %v359, %v361
    %v363 = vsub.f32 1.0, %v362
    %v364 = vmul.f32 %v361, %v363
    %v365 = vadd.f32 %v361, %v364
    %vm366 = vweird.f32 %v359
    %vm367 = vweird.f32 %v361
    %vm368 = vmor %vm366, %vm367
    %v369 = vsel %vm368, %v361, %v365
    %v370 = vand.u32 2147483647, %v359
    %vm371 = vcmp.eq.f32.partialorder %v370, 8.507059e+37
    %v372 = vand.u32 %v359, 2147483648
    %v373 = vor.u32 1.1754944e-38, %v372
    %v374 = vsel %vm371, %v373, %v369
    %v375 = vmul.f32 1.0, %v374
    %v376 = vrcp.pop %v360
    %v377 = vmul.f32 %v360, %v376
    %v378 = vsub.f32 1.0, %v377
    %v379 = vmul.f32 %v376, %v378
    %v380 = vadd.f32 %v376, %v379
    %vm381 = vweird.f32 %v360
    %vm382 = vweird.f32 %v376
    %vm383 = vmor %vm381, %vm382
    %v384 = vsel %vm383, %v376, %v380
    %v385 = vand.u32 2147483647, %v360
    %vm386 = vcmp.eq.f32.partialorder %v385, 8.507059e+37
    %v387 = vand.u32 %v360, 2147483648
    %v388 = vor.u32 1.1754944e-38, %v387
    %v389 = vsel %vm386, %v388, %v384
    %v390 = vmul.f32 1.0, %v389
    %v391 = vmul.f32 %v375, 0.3
    %v392 = vmul.f32 %v390, 0.3
    %v393 = vadd.f32 %v391, 0.69
    %v394 = vadd.f32 %v392, 0.69
    %v395 = vmul.f32 %v393, %v120
    %v396 = vmul.f32 %v394, %v121
    %v397 = vld [vmem:[%s1] sm:$0xff]
    %v398 = vld [vmem:[%s1 + $0x8] sm:$0xff]
    %v399 = vmul.f32 %v397, 0.6
    %v400 = vmul.f32 %v398, 0.6
    %v401 = vadd.f32 %v395, %v399
    %v402 = vadd.f32 %v396, %v400
    %403 = vst [vmem:[#allocation12] sm:$0xff] %v401
    %404 = vst [vmem:[#allocation12 + $0x8] sm:$0xff] %v402
    %405 = vst [vmem:[#allocation13] sm:$0xff] %v393
    %406 = vst [vmem:[#allocation13 + $0x8] sm:$0xff] %v394
    %407 = vst [vmem:[#allocation15] sm:$0xff] %v296
    %408 = vst [vmem:[#allocation15 + $0x8] sm:$0xff] %v297
    // Predicated region
    $region62: #{hpc_step_padded.1} parent=1 // pred_check
      _
    $region63: #{hpc_step_padded.1} parent=1 // pred_check_branch
      %410 = sbr.rel (0) target = $region65
    $region64: #{hpc_step_padded.1} parent=1 // pred_region
      %412 = vsyncadd [#allocation5], 0
      %s413 = sshll.u32 [#allocation12], 4
      %s414 = int_to_ptr.vmem [resolvable:$true] %s413
      %s415 = sshll.u32 %s10, 4
      %s416 = int_to_ptr.hbm [resolvable:$true] %s415
      %421 = dma.vmem_to_hbm [thread:$0]  %s414, 256, %s416, [#allocation5], 128, 128, 8
    $region65: #{hpc_step_padded.1} parent=1 // pred_fallthru
      _
    // Predicated region
    $region66: #{hpc_step_padded.1} parent=1 // pred_check
      _
    $region67: #{hpc_step_padded.1} parent=1 // pred_check_branch
      %423 = sbr.rel (0) target = $region69
    $region68: #{hpc_step_padded.1} parent=1 // pred_region
      %425 = vsyncadd [#allocation14], 0
      %s426 = sshll.u32 [#allocation13], 4
      %s427 = int_to_ptr.vmem [resolvable:$true] %s426
      %s428 = sshll.u32 %s11, 4
      %s429 = int_to_ptr.hbm [resolvable:$true] %s428
      %434 = dma.vmem_to_hbm [thread:$0]  %s427, 256, %s429, [#allocation14], 128, 128, 8
    $region69: #{hpc_step_padded.1} parent=1 // pred_fallthru
      _
    // Predicated region
    $region70: #{hpc_step_padded.1} parent=1 // pred_check
      _
    $region71: #{hpc_step_padded.1} parent=1 // pred_check_branch
      %436 = sbr.rel (0) target = $region73
    $region72: #{hpc_step_padded.1} parent=1 // pred_region
      %438 = vsyncadd [#allocation14], 0
      %s439 = sshll.u32 [#allocation15], 4
      %s440 = int_to_ptr.vmem [resolvable:$true] %s439
      %s441 = sshll.u32 %s12, 4
      %s442 = int_to_ptr.hbm [resolvable:$true] %s441
      %447 = dma.vmem_to_hbm [thread:$0]  %s440, 256, %s442, [#allocation14], 128, 128, 8
    $region73: #{hpc_step_padded.1} parent=1 // pred_fallthru
      _
    // Predicated region
    $region74: #{hpc_step_padded.1} parent=1 // pred_check
      _
    $region75: #{hpc_step_padded.1} parent=1 // pred_check_branch
      %449 = sbr.rel (0) target = $region77
    $region76: #{hpc_step_padded.1} parent=1 // pred_region
      %451 = dma.done [#allocation5], 256
    $region77: #{hpc_step_padded.1} parent=1 // pred_fallthru
      _
    // Predicated region
    $region78: #{hpc_step_padded.1} parent=1 // pred_check
      _
    $region79: #{hpc_step_padded.1} parent=1 // pred_check_branch
      %453 = sbr.rel (0) target = $region81
    $region80: #{hpc_step_padded.1} parent=1 // pred_region
      %455 = dma.done [#allocation14], 256
    $region81: #{hpc_step_padded.1} parent=1 // pred_fallthru
      _
    // Predicated region
    $region82: #{hpc_step_padded.1} parent=1 // pred_check
      _
    $region83: #{hpc_step_padded.1} parent=1 // pred_check_branch
      %457 = sbr.rel (0) target = $region85
    $region84: #{hpc_step_padded.1} parent=1 // pred_region
      %459 = dma.done [#allocation14], 256
    $region85: #{hpc_step_padded.1} parent=1 // pred_fallthru
      _
    %460 = vsyncpa [#allocation4], 1
    %461 = vsyncpa [#allocation7], 1
    %462 = vsyncpa [#allocation10], 1
    %463 = vsyncpa [#allocation5], 1
    %464 = vsyncpa [#allocation14], 1

</llo_original>
